<compile_context>
chip_gen: v7x
topology: tpu7x:2x2x1
jax: 0.10.0
libtpu: 0.0.40
codegen_flags: <defaults>
</compile_context>

<pallas_src>
import jax
import jax.numpy as jnp
from jax.experimental import pallas as pl
from jax.experimental.pallas import tpu as pltpu


def _round8(v):
    return ((v + 7) // 8) * 8


# ---------------------------------------------------------------------------
# Fused Pallas kernel (factory closes over static sizes / slab offsets)
# ---------------------------------------------------------------------------
def _make_kernel(n, in_c, hidden, e_dim, r):
    # 8-sublane-aligned segment offsets inside the packed slabs.
    ragg_r0 = _round8(n)                       # node_slab: route_agg rows
    b1_r0 = _round8(in_c)                      # h_slab: b1 row
    w2_r0 = b1_r0 + 8                          # h_slab: W2 rows
    b2_r0 = w2_r0 + _round8(hidden)            # h_slab: b2 row
    we_r0 = _round8(hidden)                    # col_slab: we rows
    rb_r0 = we_r0 + 8                          # col_slab: route_bias rows

    def kernel(x_ref, ea_ref, node_ref, h_ref, col_ref, mrt_ref, o_ref):
        # Unpack slabs (static, 8-aligned sublane slices of VMEM refs).
        a_hat = node_ref[pl.ds(0, n), :]                 # [N, N]
        ragg = node_ref[pl.ds(ragg_r0, r), :]            # [R, N]
        w1 = h_ref[pl.ds(0, in_c), :]                    # [Cin, H]
        b1 = h_ref[pl.ds(b1_r0, 1), :]                   # [1, H]
        w2 = h_ref[pl.ds(w2_r0, hidden), :]              # [H, H]
        b2 = h_ref[pl.ds(b2_r0, 1), :]                   # [1, H]
        wh = col_ref[pl.ds(0, hidden), :]                # [H, 1]
        we = col_ref[pl.ds(we_r0, e_dim), :]             # [E_dim, 1]
        rb = col_ref[pl.ds(rb_r0, r), :]                 # [R, 1]

        # GCNConv 1 + ReLU:  h = relu(A_hat @ (X @ W1) + b1)
        xw = jnp.dot(x_ref[...], w1, preferred_element_type=jnp.float32)
        h = jnp.dot(a_hat, xw, preferred_element_type=jnp.float32) + b1
        h = jnp.maximum(h, 0.0)

        # GCNConv 2 + ReLU:  h = relu(A_hat @ (h @ W2) + b2)
        hw = jnp.dot(h, w2, preferred_element_type=jnp.float32)
        h = jnp.dot(a_hat, hw, preferred_element_type=jnp.float32) + b2
        h = jnp.maximum(h, 0.0)

        # Folded tail (exact: everything past the ReLU is linear):
        #   routes[r] = sum_{e in route r} [h2[src[e]] ; edge_attr[e]] @ W_fc + b_fc
        #             summed over the fc output dim.
        rh = jnp.dot(ragg, h, preferred_element_type=jnp.float32)        # [R, H]
        routes = jnp.dot(rh, wh, preferred_element_type=jnp.float32)     # [R, 1]
        re = jnp.dot(mrt_ref[...], ea_ref[...],
                     preferred_element_type=jnp.float32)                 # [R, E_dim]
        routes = routes + jnp.dot(re, we, preferred_element_type=jnp.float32)
        o_ref[...] = routes + rb                                          # [R, 1]

    return kernel


# ---------------------------------------------------------------------------
# One-time static precomputation (graph / route structure & folded params)
# ---------------------------------------------------------------------------
def build_normalized_adj(edge_index, num_nodes):
    """Dense D^-1/2 (A + I) D^-1/2, matching torch_geometric GCNConv gcn_norm."""
    self_loops = jnp.arange(num_nodes, dtype=edge_index.dtype)
    row = jnp.concatenate([edge_index[0], self_loops])   # src
    col = jnp.concatenate([edge_index[1], self_loops])   # dst (aggregation target)
    deg = jnp.zeros((num_nodes,), jnp.float32).at[col].add(1.0)
    dinv = jnp.where(deg > 0, 1.0 / jnp.sqrt(deg), 0.0)
    norm = dinv[row] * dinv[col]
    # out[col] += norm * x[row]  ==>  A_hat[col, row] = norm
    return jnp.zeros((num_nodes, num_nodes), jnp.float32).at[col, row].add(norm)


def build_static_params(params, edge_index, num_nodes, num_edges,
                        route_starts, route_ends):
    n = num_nodes
    r = int(route_starts.shape[0])
    in_c = int(params["w1"].shape[0])
    hidden = int(params["w2"].shape[1])
    e_dim = int(params["w_fc"].shape[0]) - hidden

    a_hat = build_normalized_adj(edge_index, n)                              # [N, N]
    gather = jax.nn.one_hot(edge_index[0], n, dtype=jnp.float32)             # [E, N]
    eid = jnp.arange(num_edges)[:, None]
    mask_t = ((eid >= route_starts[None, :]) &
              (eid < route_ends[None, :])).astype(jnp.float32)               # [E, R]
    mask_rt = mask_t.T                                                       # [R, E]
    route_agg = mask_rt @ gather                                             # [R, N]

    # --- node slab: A_hat | route_agg ---------------------------------------
    ragg_r0 = _round8(n)
    node_slab = jnp.zeros((ragg_r0 + r, n), jnp.float32)
    node_slab = (node_slab.at[:n, :].set(a_hat)
                          .at[ragg_r0:ragg_r0 + r, :].set(route_agg))

    # --- hidden slab: W1 | b1 | W2 | b2 --------------------------------------
    b1_r0 = _round8(in_c)
    w2_r0 = b1_r0 + 8
    b2_r0 = w2_r0 + _round8(hidden)
    h_slab = jnp.zeros((b2_r0 + 1, hidden), jnp.float32)
    h_slab = (h_slab.at[:in_c, :].set(params["w1"])
                    .at[b1_r0, :].set(params["b1"].reshape(-1))
                    .at[w2_r0:w2_r0 + hidden, :].set(params["w2"])
                    .at[b2_r0, :].set(params["b2"].reshape(-1)))

    # --- column slab: wh | we | route_bias (fc output-dim sum folded) --------
    w_eff = jnp.sum(params["w_fc"], axis=1, keepdims=True)                   # [H+E_dim, 1]
    b_eff = jnp.sum(params["b_fc"])                                          # scalar
    counts = (route_ends - route_starts).astype(jnp.float32)[:, None]        # [R, 1]
    route_bias = b_eff * counts                                              # [R, 1]
    we_r0 = _round8(hidden)
    rb_r0 = we_r0 + 8
    col_slab = jnp.zeros((rb_r0 + r, 1), jnp.float32)
    col_slab = (col_slab.at[:hidden, :].set(w_eff[:hidden])
                        .at[we_r0:we_r0 + e_dim, :].set(w_eff[hidden:])
                        .at[rb_r0:rb_r0 + r, :].set(route_bias))

    dims = dict(n=n, in_c=in_c, hidden=hidden, e_dim=e_dim, r=r)
    return (node_slab, h_slab, col_slab, mask_rt), dims


def build_stgcn_forward(params, edge_index, num_nodes, num_edges,
                        route_starts, route_ends):
    """Returns a jitted forward(x, edge_attr) -> routes[R]; all static folding
    (route matrices, fc sum, slab packing) is done once here."""
    statics, d = build_static_params(params, edge_index, num_nodes, num_edges,
                                     route_starts, route_ends)
    kernel = _make_kernel(**d)
    vmem = pl.BlockSpec(memory_space=pltpu.MemorySpace.VMEM)
    call = pl.pallas_call(
        kernel,
        out_shape=jax.ShapeDtypeStruct((d["r"], 1), jnp.float32),
        in_specs=[vmem] * 6,
        out_specs=vmem,
    )

    @jax.jit
    def forward(x, edge_attr):
        out = call(x, edge_attr, *statics)
        return out.reshape(-1)                 # (R, 1) -> (R,)

    return forward


# ---------------------------------------------------------------------------
# Plain-JAX reference (unfolded), for correctness checking
# ---------------------------------------------------------------------------
def stgcn_reference(params, x, edge_index, edge_attr, route_starts, route_ends):
    a_hat = build_normalized_adj(edge_index, x.shape[0])
    h = jnp.maximum(a_hat @ (x @ params["w1"]) + params["b1"], 0.0)
    h = jnp.maximum(a_hat @ (h @ params["w2"]) + params["b2"], 0.0)
    src = edge_index[0]
    ef = jnp.concatenate([h[src], edge_attr], axis=1)
    y = ef @ params["w_fc"] + params["b_fc"]
    per_edge = y.sum(axis=1)
    eid = jnp.arange(edge_index.shape[1])[None, :]
    mask = ((eid >= route_starts[:, None]) &
            (eid < route_ends[:, None])).astype(jnp.float32)
    return mask @ per_edge


# ---------------------------------------------------------------------------
# Main
# ---------------------------------------------------------------------------
if __name__ == "__main__":
    IN_CHANNELS = 4
    HIDDEN = 32
    OUT_CHANNELS = 3
    NUM_NODES = 16
    NUM_EDGES = 48
    EDGE_ATTR_DIM = 2  # fc takes hidden + 2

    key = jax.random.PRNGKey(0)
    keys = jax.random.split(key, 10)

    x = jax.random.normal(keys[0], (NUM_NODES, IN_CHANNELS), jnp.float32)
    edge_index = jax.random.randint(keys[1], (2, NUM_EDGES), 0, NUM_NODES, jnp.int32)
    edge_attr = jax.random.normal(keys[2], (NUM_EDGES, EDGE_ATTR_DIM), jnp.float32)

    # route_indices = [(0,16), (16,32), (32,48)]  (contiguous edge ranges)
    route_starts = jnp.array([0, 16, 32], jnp.int32)
    route_ends = jnp.array([16, 32, 48], jnp.int32)

    params = {
        "w1": jax.random.normal(keys[3], (IN_CHANNELS, HIDDEN), jnp.float32) * 0.2,
        "b1": jax.random.normal(keys[4], (1, HIDDEN), jnp.float32) * 0.1,
        "w2": jax.random.normal(keys[5], (HIDDEN, HIDDEN), jnp.float32) * 0.2,
        "b2": jax.random.normal(keys[6], (1, HIDDEN), jnp.float32) * 0.1,
        "w_fc": jax.random.normal(keys[7], (HIDDEN + EDGE_ATTR_DIM, OUT_CHANNELS),
                                  jnp.float32) * 0.2,
        "b_fc": jax.random.normal(keys[8], (1, OUT_CHANNELS), jnp.float32) * 0.1,
    }

    # One-time build: folds graph/route structure + fc params into packed slabs.
    forward = build_stgcn_forward(params, edge_index, NUM_NODES, NUM_EDGES,
                                  route_starts, route_ends)

    out = jax.block_until_ready(forward(x, edge_attr))

    ref = stgcn_reference(params, x, edge_index, edge_attr, route_starts, route_ends)
    assert out.shape == (3,)
    assert jnp.allclose(out, ref, rtol=1e-3, atol=1e-3), (out, ref)

    print("KERNEL_OK")
</pallas_src>

<mosaic_0001>
module attributes {stable_mosaic.version = 11 : i64} {
  func.func @kernel(%arg0: memref<16x4xf32, #tpu.memory_space<vmem>>, %arg1: memref<48x2xf32, #tpu.memory_space<vmem>>, %arg2: memref<19x16xf32, #tpu.memory_space<vmem>>, %arg3: memref<49x32xf32, #tpu.memory_space<vmem>>, %arg4: memref<43x1xf32, #tpu.memory_space<vmem>>, %arg5: memref<3x48xf32, #tpu.memory_space<vmem>>, %arg6: memref<3x1xf32, #tpu.memory_space<vmem>>) attributes {dimension_semantics = [], scalar_prefetch = 0 : i64, scratch_operands = 0 : i64, tpu.core_type = #tpu.core_type<tc>} {
    %c0 = arith.constant 0 : index
    %c0_0 = arith.constant 0 : index
    %0 = vector.load %arg2[%c0, %c0_0] : memref<19x16xf32, #tpu.memory_space<vmem>>, vector<16x16xf32>
    %c16 = arith.constant 16 : index
    %c0_1 = arith.constant 0 : index
    %1 = vector.load %arg2[%c16, %c0_1] : memref<19x16xf32, #tpu.memory_space<vmem>>, vector<3x16xf32>
    %c0_2 = arith.constant 0 : index
    %c0_3 = arith.constant 0 : index
    %2 = vector.load %arg3[%c0_2, %c0_3] : memref<49x32xf32, #tpu.memory_space<vmem>>, vector<4x32xf32>
    %c8 = arith.constant 8 : index
    %c0_4 = arith.constant 0 : index
    %3 = vector.load %arg3[%c8, %c0_4] : memref<49x32xf32, #tpu.memory_space<vmem>>, vector<1x32xf32>
    %c16_5 = arith.constant 16 : index
    %c0_6 = arith.constant 0 : index
    %4 = vector.load %arg3[%c16_5, %c0_6] : memref<49x32xf32, #tpu.memory_space<vmem>>, vector<32x32xf32>
    %c48 = arith.constant 48 : index
    %c0_7 = arith.constant 0 : index
    %5 = vector.load %arg3[%c48, %c0_7] : memref<49x32xf32, #tpu.memory_space<vmem>>, vector<1x32xf32>
    %c0_8 = arith.constant 0 : index
    %c0_9 = arith.constant 0 : index
    %6 = vector.load %arg4[%c0_8, %c0_9] : memref<43x1xf32, #tpu.memory_space<vmem>>, vector<32x1xf32>
    %c32 = arith.constant 32 : index
    %c0_10 = arith.constant 0 : index
    %7 = vector.load %arg4[%c32, %c0_10] : memref<43x1xf32, #tpu.memory_space<vmem>>, vector<2x1xf32>
    %c40 = arith.constant 40 : index
    %c0_11 = arith.constant 0 : index
    %8 = vector.load %arg4[%c40, %c0_11] : memref<43x1xf32, #tpu.memory_space<vmem>>, vector<3x1xf32>
    %c0_12 = arith.constant 0 : index
    %c0_13 = arith.constant 0 : index
    %9 = vector.load %arg0[%c0_12, %c0_13] : memref<16x4xf32, #tpu.memory_space<vmem>>, vector<16x4xf32>
    %cst = arith.constant dense<0.000000e+00> : vector<16x32xf32>
    %10 = tpu.matmul %9, %2, %cst {dimension_numbers = #tpu.dot_dimension_numbers<[1], [0], [0], [1], [0, 0, 1, 1], [], []>} : vector<16x4xf32>, vector<4x32xf32>, vector<16x32xf32> -> vector<16x32xf32>
    %cst_14 = arith.constant dense<0.000000e+00> : vector<16x32xf32>
    %11 = tpu.matmul %0, %10, %cst_14 {dimension_numbers = #tpu.dot_dimension_numbers<[1], [0], [0], [1], [0, 0, 1, 1], [], []>} : vector<16x16xf32>, vector<16x32xf32>, vector<16x32xf32> -> vector<16x32xf32>
    %12 = vector.broadcast %3 : vector<1x32xf32> to vector<16x32xf32>
    %13 = arith.addf %11, %12 : vector<16x32xf32>
    %cst_15 = arith.constant 0.000000e+00 : f32
    %14 = vector.broadcast %cst_15 : f32 to vector<16x32xf32>
    %15 = arith.maximumf %13, %14 : vector<16x32xf32>
    %cst_16 = arith.constant dense<0.000000e+00> : vector<16x32xf32>
    %16 = tpu.matmul %15, %4, %cst_16 {dimension_numbers = #tpu.dot_dimension_numbers<[1], [0], [0], [1], [0, 0, 1, 1], [], []>} : vector<16x32xf32>, vector<32x32xf32>, vector<16x32xf32> -> vector<16x32xf32>
    %cst_17 = arith.constant dense<0.000000e+00> : vector<16x32xf32>
    %17 = tpu.matmul %0, %16, %cst_17 {dimension_numbers = #tpu.dot_dimension_numbers<[1], [0], [0], [1], [0, 0, 1, 1], [], []>} : vector<16x16xf32>, vector<16x32xf32>, vector<16x32xf32> -> vector<16x32xf32>
    %18 = vector.broadcast %5 : vector<1x32xf32> to vector<16x32xf32>
    %19 = arith.addf %17, %18 : vector<16x32xf32>
    %cst_18 = arith.constant 0.000000e+00 : f32
    %20 = vector.broadcast %cst_18 : f32 to vector<16x32xf32>
    %21 = arith.maximumf %19, %20 : vector<16x32xf32>
    %cst_19 = arith.constant dense<0.000000e+00> : vector<3x32xf32>
    %22 = tpu.matmul %1, %21, %cst_19 {dimension_numbers = #tpu.dot_dimension_numbers<[1], [0], [0], [1], [0, 0, 1, 1], [], []>} : vector<3x16xf32>, vector<16x32xf32>, vector<3x32xf32> -> vector<3x32xf32>
    %cst_20 = arith.constant dense<0.000000e+00> : vector<3x1xf32>
    %23 = tpu.matmul %22, %6, %cst_20 {dimension_numbers = #tpu.dot_dimension_numbers<[1], [0], [0], [1], [0, 0, 1, 1], [], []>} : vector<3x32xf32>, vector<32x1xf32>, vector<3x1xf32> -> vector<3x1xf32>
    %c0_21 = arith.constant 0 : index
    %c0_22 = arith.constant 0 : index
    %24 = vector.load %arg5[%c0_21, %c0_22] : memref<3x48xf32, #tpu.memory_space<vmem>>, vector<3x48xf32>
    %c0_23 = arith.constant 0 : index
    %c0_24 = arith.constant 0 : index
    %25 = vector.load %arg1[%c0_23, %c0_24] : memref<48x2xf32, #tpu.memory_space<vmem>>, vector<48x2xf32>
    %cst_25 = arith.constant dense<0.000000e+00> : vector<3x2xf32>
    %26 = tpu.matmul %24, %25, %cst_25 {dimension_numbers = #tpu.dot_dimension_numbers<[1], [0], [0], [1], [0, 0, 1, 1], [], []>} : vector<3x48xf32>, vector<48x2xf32>, vector<3x2xf32> -> vector<3x2xf32>
    %cst_26 = arith.constant dense<0.000000e+00> : vector<3x1xf32>
    %27 = tpu.matmul %26, %7, %cst_26 {dimension_numbers = #tpu.dot_dimension_numbers<[1], [0], [0], [1], [0, 0, 1, 1], [], []>} : vector<3x2xf32>, vector<2x1xf32>, vector<3x1xf32> -> vector<3x1xf32>
    %28 = arith.addf %23, %27 : vector<3x1xf32>
    %29 = arith.addf %28, %8 : vector<3x1xf32>
    %c0_27 = arith.constant 0 : index
    %c0_28 = arith.constant 0 : index
    %30 = vector.load %arg6[%c0_27, %c0_28] : memref<3x1xf32, #tpu.memory_space<vmem>>, vector<3x1xf32>
    tpu.vector_store %arg6[%c0_27, %c0_28], %29 {strides = array<i32>} : memref<3x1xf32, #tpu.memory_space<vmem>>, vector<3x1xf32>,
    return
  }
}

</mosaic_0001>

<llo_original>
// kernel: forward.1
$region0: #{forward.1}
  #allocation0 [shape = 'u32[]', space=smem, size = 0x4, offset = 0x4, fixed_abs, tag = 'smem constant byte address 0x4 - core index']
  #allocation1 [shape = 'u32[144,128]{1,0:T(1,128)}', space=vmem, size = 0x12000, scoped, tag = 'internal scratch']
  %s0 = inlined_call_operand.vmem [shape: f32[16,4], index: 0, kind: input, shape index: {}]
  %s1 = inlined_call_operand.vmem [shape: f32[48,2], index: 1, kind: input, shape index: {}]
  %s2 = inlined_call_operand.vmem [shape: f32[19,16], index: 2, kind: input, shape index: {}]
  %s3 = inlined_call_operand.vmem [shape: f32[49,32], index: 3, kind: input, shape index: {}]
  %s4 = inlined_call_operand.hbm [shape: f32[43,1], index: 4, kind: input, shape index: {}]
  %s5 = inlined_call_operand.vmem [shape: f32[3,48], index: 5, kind: input, shape index: {}]
  %s6 = inlined_call_operand.vmem [shape: f32[3,1], index: 6, kind: output, shape index: {}]
  %s7 = sld [smem:[#allocation0]]
  $region38: #{forward.1} parent=0
    _
  %s9 = ssub.s32 1, %s7
  %s10 = scalar_select 0, %s9, %s7
  $region1: #{forward.1} parent=0
    #allocation2 [shape = 'u8[24576]{0}', space=vmem, size = 0x6000, scoped, tag = 'input window, operand 4, single buffered']
    #allocation3 [shape = 's32[1]{0}', space=sflag, size = 0x4, scoped, tag = 'scoped memory for forward.1']
    %11 = vsyncpa [#allocation3], 0
    // Predicated region
    $region2: #{forward.1} parent=1 // pred_check
      _
    $region3: #{forward.1} parent=1 // pred_check_branch
      %13 = sbr.rel (0) target = $region5
    $region4: #{forward.1} parent=1 // pred_region
      _
    $region5: #{forward.1} parent=1 // pred_fallthru
      _
    // Predicated region
    $region6: #{forward.1} parent=1 // pred_check
      _
    $region7: #{forward.1} parent=1 // pred_check_branch
      %15 = sbr.rel (0) target = $region9
    $region8: #{forward.1} parent=1 // pred_region
      _
    $region9: #{forward.1} parent=1 // pred_fallthru
      _
    // Predicated region
    $region10: #{forward.1} parent=1 // pred_check
      _
    $region11: #{forward.1} parent=1 // pred_check_branch
      %17 = sbr.rel (0) target = $region13
    $region12: #{forward.1} parent=1 // pred_region
      _
    $region13: #{forward.1} parent=1 // pred_fallthru
      _
    // Predicated region
    $region14: #{forward.1} parent=1 // pred_check
      _
    $region15: #{forward.1} parent=1 // pred_check_branch
      %19 = sbr.rel (0) target = $region17
    $region16: #{forward.1} parent=1 // pred_region
      _
    $region17: #{forward.1} parent=1 // pred_fallthru
      _
    // Predicated region
    $region18: #{forward.1} parent=1 // pred_check
      _
    $region19: #{forward.1} parent=1 // pred_check_branch
      %21 = sbr.rel (0) target = $region21
    $region20: #{forward.1} parent=1 // pred_region
      %s23 = ssub.s32 768, 768
      %24 = vsyncadd [#allocation3], %s23
      %s25 = sshll.u32 [#allocation2], 4
      %s26 = int_to_ptr.vmem [resolvable:$true] %s25
      %31 = dma.hbm_to_vmem [thread:$0]  %s4, 768, %s26, [#allocation3], 128, 128, 8
    $region21: #{forward.1} parent=1 // pred_fallthru
      _
    // Predicated region
    $region22: #{forward.1} parent=1 // pred_check
      _
    $region23: #{forward.1} parent=1 // pred_check_branch
      %33 = sbr.rel (0) target = $region25
    $region24: #{forward.1} parent=1 // pred_region
      _
    $region25: #{forward.1} parent=1 // pred_fallthru
      _
    // Predicated region
    $region26: #{forward.1} parent=1 // pred_check
      _
    $region27: #{forward.1} parent=1 // pred_check_branch
      %35 = sbr.rel (0) target = $region29
    $region28: #{forward.1} parent=1 // pred_region
      %36 = dma.done [#allocation3], 768
    $region29: #{forward.1} parent=1 // pred_fallthru
      _
    %v37 = vld [vmem:[%s2] sm:$0xff]
    %v38 = vld [vmem:[%s2 + $0x8] sm:$0xff]
    %v39 = vld [vmem:[%s2 + $0x10] sm:$0x7]
    %v40 = vld [vmem:[%s3] sm:$0xf]
    %v41 = vld [vmem:[%s3 + $0x8] sm:$0x1]
    %v42 = vld [vmem:[%s3 + $0x10] sm:$0xff]
    %v43 = vld [vmem:[%s3 + $0x18] sm:$0xff]
    %v44 = vld [vmem:[%s3 + $0x20] sm:$0xff]
    %v45 = vld [vmem:[%s3 + $0x28] sm:$0xff]
    %v46 = vld [vmem:[%s3 + $0x30] sm:$0x1]
    %v47 = vld [vmem:[#allocation2] sm:$0xff]
    %v48 = vld [vmem:[#allocation2 + $0x8] sm:$0xff]
    %v49 = vld [vmem:[#allocation2 + $0x10] sm:$0xff]
    %v50 = vld [vmem:[#allocation2 + $0x18] sm:$0xff]
    %v51 = vld [vmem:[#allocation2 + $0x20] sm:$0x3]
    %v52 = vld [vmem:[#allocation2 + $0x28] sm:$0x7]
    %v53 = vld [vmem:[%s0] sm:$0xff]
    %v54 = vld [vmem:[%s0 + $0x8] sm:$0xff]
    %vm55 = vcmask 31744
    %v57 = vsel %vm55, %v53, 0
    %v60 = vsel %vm55, %v54, 0
    %vm62 = vcmask 1043456
    %v64 = vsel %vm62, %v40, 0
    %66 = vmatprep.subr.mxu0 0.0
    %67 = vmatpush1.msra.mxu0 %v64
    %68 = vmatprep.subr.mxu0 0.0
    %69 = vmatpush1.msra.mxu0 0.0
    %70 = vmatprep.subr.mxu0 0.0
    %71 = vmatpush1.msra.mxu0 0.0
    %72 = vmatprep.subr.mxu0 0.0
    %73 = vmatpush1.msra.mxu0 0.0
    %74 = vmatprep.subr.mxu0 0.0
    %75 = vmatpush1.msra.mxu0 0.0
    %76 = vmatprep.subr.mxu0 0.0
    %77 = vmatpush1.msra.mxu0 0.0
    %78 = vmatprep.subr.mxu0 0.0
    %79 = vmatpush1.msra.mxu0 0.0
    %80 = vmatprep.subr.mxu0 0.0
    %81 = vmatpush1.msra.mxu0 0.0
    %82 = vmatprep.subr.mxu0 0.0
    %83 = vmatpush1.msra.mxu0 0.0
    %84 = vmatprep.subr.mxu0 0.0
    %85 = vmatpush1.msra.mxu0 0.0
    %86 = vmatprep.subr.mxu0 0.0
    %87 = vmatpush1.msra.mxu0 0.0
    %88 = vmatprep.subr.mxu0 0.0
    %89 = vmatpush1.msra.mxu0 0.0
    %90 = vmatprep.subr.mxu0 0.0
    %91 = vmatpush1.msra.mxu0 0.0
    %92 = vmatprep.subr.mxu0 0.0
    %93 = vmatpush1.msra.mxu0 0.0
    %94 = vmatprep.subr.mxu0 0.0
    %95 = vmatpush1.msra.mxu0 0.0
    %96 = vmatprep.subr.mxu0 0.0
    %97 = vmatpush1.msra.mxu0 0.0
    %98 = vmatprep.subr.mxu0 0.0
    %99 = vmatpush1.msra.mxu0 0.0
    %100 = vmatprep.subr.mxu0 0.0
    %101 = vmatpush1.msra.mxu0 0.0
    %102 = vmatprep.subr.mxu0 0.0
    %103 = vmatpush1.msra.mxu0 0.0
    %104 = vmatprep.subr.mxu0 0.0
    %105 = vmatpush1.msra.mxu0 0.0
    %106 = vmatprep.subr.mxu0 0.0
    %107 = vmatpush1.msra.mxu0 0.0
    %108 = vmatprep.subr.mxu0 0.0
    %109 = vmatpush1.msra.mxu0 0.0
    %110 = vmatprep.subr.mxu0 0.0
    %111 = vmatpush1.msra.mxu0 0.0
    %112 = vmatprep.subr.mxu0 0.0
    %113 = vmatpush1.msra.mxu0 0.0
    %114 = vmatprep.subr.mxu0 0.0
    %115 = vmatpush1.msra.mxu0 0.0
    %116 = vmatprep.subr.mxu0 0.0
    %117 = vmatpush1.msra.mxu0 0.0
    %118 = vmatprep.subr.mxu0 0.0
    %119 = vmatpush1.msra.mxu0 0.0
    %120 = vmatprep.subr.mxu0 0.0
    %121 = vmatpush1.msra.mxu0 0.0
    %122 = vmatprep.subr.mxu0 0.0
    %123 = vmatpush1.msra.mxu0 0.0
    %124 = vmatprep.subr.mxu0 0.0
    %125 = vmatpush1.msra.mxu0 0.0
    %126 = vmatprep.subr.mxu0 0.0
    %127 = vmatpush1.msra.mxu0 0.0
    %128 = vmatprep.subr.mxu0 0.0
    %129 = vmatpush1.msra.mxu0 0.0
    %130 = vmatprep.mubr.f32.mxu0 0.0
    %131 = vmatmul.mubr.f32.gmra.mrb[0].mxu0 %v57
    %v132 = vpop.f32.mrb[0].mxu0
    %v133 = vadd.f32 0.0, %v132
    %v134 = vpop.f32.mrb[0].mxu0
    %135 = vmatprep.mubr.f32.mxu0 0.0
    %136 = vmatmul.mubr.f32.gmra.mrb[0].mxu0 %v60
    %v137 = vpop.f32.mrb[0].mxu0
    %v138 = vadd.f32 0.0, %v137
    %v139 = vpop.f32.mrb[0].mxu0
    %140 = vdwg.mxu0
    %v141 = vlaneseq
    %v142 = vshrl.u32 %v141, 7
    %v143 = vsub.s32 0, %v142
    %v144 = vrot.slane %v41, %v143
    %vm145 = vcmask 130048
    %v147 = vsel %vm145, %v37, 0
    %v150 = vsel %vm145, %v38, 0
    %152 = vmatprep.subr.mxu0 0.0
    %153 = vmatpush1.msra.mxu0 %v133
    %154 = vmatprep.subr.mxu0 0.0
    %155 = vmatpush1.msra.mxu0 %v138
    %156 = vmatprep.subr.mxu0 0.0
    %157 = vmatpush1.msra.mxu0 0.0
    %158 = vmatprep.subr.mxu0 0.0
    %159 = vmatpush1.msra.mxu0 0.0
    %160 = vmatprep.subr.mxu0 0.0
    %161 = vmatpush1.msra.mxu0 0.0
    %162 = vmatprep.subr.mxu0 0.0
    %163 = vmatpush1.msra.mxu0 0.0
    %164 = vmatprep.subr.mxu0 0.0
    %165 = vmatpush1.msra.mxu0 0.0
    %166 = vmatprep.subr.mxu0 0.0
    %167 = vmatpush1.msra.mxu0 0.0
    %168 = vmatprep.subr.mxu0 0.0
    %169 = vmatpush1.msra.mxu0 0.0
    %170 = vmatprep.subr.mxu0 0.0
    %171 = vmatpush1.msra.mxu0 0.0
    %172 = vmatprep.subr.mxu0 0.0
    %173 = vmatpush1.msra.mxu0 0.0
    %174 = vmatprep.subr.mxu0 0.0
    %175 = vmatpush1.msra.mxu0 0.0
    %176 = vmatprep.subr.mxu0 0.0
    %177 = vmatpush1.msra.mxu0 0.0
    %178 = vmatprep.subr.mxu0 0.0
    %179 = vmatpush1.msra.mxu0 0.0
    %180 = vmatprep.subr.mxu0 0.0
    %181 = vmatpush1.msra.mxu0 0.0
    %182 = vmatprep.subr.mxu0 0.0
    %183 = vmatpush1.msra.mxu0 0.0
    %184 = vmatprep.subr.mxu0 0.0
    %185 = vmatpush1.msra.mxu0 0.0
    %186 = vmatprep.subr.mxu0 0.0
    %187 = vmatpush1.msra.mxu0 0.0
    %188 = vmatprep.subr.mxu0 0.0
    %189 = vmatpush1.msra.mxu0 0.0
    %190 = vmatprep.subr.mxu0 0.0
    %191 = vmatpush1.msra.mxu0 0.0
    %192 = vmatprep.subr.mxu0 0.0
    %193 = vmatpush1.msra.mxu0 0.0
    %194 = vmatprep.subr.mxu0 0.0
    %195 = vmatpush1.msra.mxu0 0.0
    %196 = vmatprep.subr.mxu0 0.0
    %197 = vmatpush1.msra.mxu0 0.0
    %198 = vmatprep.subr.mxu0 0.0
    %199 = vmatpush1.msra.mxu0 0.0
    %200 = vmatprep.subr.mxu0 0.0
    %201 = vmatpush1.msra.mxu0 0.0
    %202 = vmatprep.subr.mxu0 0.0
    %203 = vmatpush1.msra.mxu0 0.0
    %204 = vmatprep.subr.mxu0 0.0
    %205 = vmatpush1.msra.mxu0 0.0
    %206 = vmatprep.subr.mxu0 0.0
    %207 = vmatpush1.msra.mxu0 0.0
    %208 = vmatprep.subr.mxu0 0.0
    %209 = vmatpush1.msra.mxu0 0.0
    %210 = vmatprep.subr.mxu0 0.0
    %211 = vmatpush1.msra.mxu0 0.0
    %212 = vmatprep.subr.mxu0 0.0
    %213 = vmatpush1.msra.mxu0 0.0
    %214 = vmatprep.subr.mxu0 0.0
    %215 = vmatpush1.msra.mxu0 0.0
    %216 = vmatprep.mubr.f32.mxu0 0.0
    %217 = vmatmul.mubr.f32.gmra.mrb[0].mxu0 %v147
    %v218 = vpop.f32.mrb[0].mxu0
    %v219 = vadd.f32 %v144, %v218
    %v220 = vpop.f32.mrb[0].mxu0
    %221 = vmatprep.mubr.f32.mxu0 0.0
    %222 = vmatmul.mubr.f32.gmra.mrb[0].mxu0 %v150
    %v223 = vpop.f32.mrb[0].mxu0
    %v224 = vadd.f32 %v144, %v223
    %v225 = vpop.f32.mrb[0].mxu0
    %226 = vdwg.mxu0
    %v227 = vmax.f32 %v219, 0.0
    %v228 = vmax.f32 %v224, 0.0
    %vm229 = vcmask 261120
    %v231 = vsel %vm229, %v227, 0
    %v234 = vsel %vm229, %v228, 0
    %236 = vmatprep.subr.mxu0 0.0
    %237 = vmatpush1.msra.mxu0 %v42
    %238 = vmatprep.subr.mxu0 0.0
    %239 = vmatpush1.msra.mxu0 %v43
    %240 = vmatprep.subr.mxu0 0.0
    %241 = vmatpush1.msra.mxu0 %v44
    %242 = vmatprep.subr.mxu0 0.0
    %243 = vmatpush1.msra.mxu0 %v45
    %244 = vmatprep.subr.mxu0 0.0
    %245 = vmatpush1.msra.mxu0 0.0
    %246 = vmatprep.subr.mxu0 0.0
    %247 = vmatpush1.msra.mxu0 0.0
    %248 = vmatprep.subr.mxu0 0.0
    %249 = vmatpush1.msra.mxu0 0.0
    %250 = vmatprep.subr.mxu0 0.0
    %251 = vmatpush1.msra.mxu0 0.0
    %252 = vmatprep.subr.mxu0 0.0
    %253 = vmatpush1.msra.mxu0 0.0
    %254 = vmatprep.subr.mxu0 0.0
    %255 = vmatpush1.msra.mxu0 0.0
    %256 = vmatprep.subr.mxu0 0.0
    %257 = vmatpush1.msra.mxu0 0.0
    %258 = vmatprep.subr.mxu0 0.0
    %259 = vmatpush1.msra.mxu0 0.0
    %260 = vmatprep.subr.mxu0 0.0
    %261 = vmatpush1.msra.mxu0 0.0
    %262 = vmatprep.subr.mxu0 0.0
    %263 = vmatpush1.msra.mxu0 0.0
    %264 = vmatprep.subr.mxu0 0.0
    %265 = vmatpush1.msra.mxu0 0.0
    %266 = vmatprep.subr.mxu0 0.0
    %267 = vmatpush1.msra.mxu0 0.0
    %268 = vmatprep.subr.mxu0 0.0
    %269 = vmatpush1.msra.mxu0 0.0
    %270 = vmatprep.subr.mxu0 0.0
    %271 = vmatpush1.msra.mxu0 0.0
    %272 = vmatprep.subr.mxu0 0.0
    %273 = vmatpush1.msra.mxu0 0.0
    %274 = vmatprep.subr.mxu0 0.0
    %275 = vmatpush1.msra.mxu0 0.0
    %276 = vmatprep.subr.mxu0 0.0
    %277 = vmatpush1.msra.mxu0 0.0
    %278 = vmatprep.subr.mxu0 0.0
    %279 = vmatpush1.msra.mxu0 0.0
    %280 = vmatprep.subr.mxu0 0.0
    %281 = vmatpush1.msra.mxu0 0.0
    %282 = vmatprep.subr.mxu0 0.0
    %283 = vmatpush1.msra.mxu0 0.0
    %284 = vmatprep.subr.mxu0 0.0
    %285 = vmatpush1.msra.mxu0 0.0
    %286 = vmatprep.subr.mxu0 0.0
    %287 = vmatpush1.msra.mxu0 0.0
    %288 = vmatprep.subr.mxu0 0.0
    %289 = vmatpush1.msra.mxu0 0.0
    %290 = vmatprep.subr.mxu0 0.0
    %291 = vmatpush1.msra.mxu0 0.0
    %292 = vmatprep.subr.mxu0 0.0
    %293 = vmatpush1.msra.mxu0 0.0
    %294 = vmatprep.subr.mxu0 0.0
    %295 = vmatpush1.msra.mxu0 0.0
    %296 = vmatprep.subr.mxu0 0.0
    %297 = vmatpush1.msra.mxu0 0.0
    %298 = vmatprep.subr.mxu0 0.0
    %299 = vmatpush1.msra.mxu0 0.0
    %300 = vmatprep.mubr.f32.mxu0 0.0
    %301 = vmatmul.mubr.f32.gmra.mrb[0].mxu0 %v231
    %v302 = vpop.f32.mrb[0].mxu0
    %v303 = vadd.f32 0.0, %v302
    %v304 = vpop.f32.mrb[0].mxu0
    %305 = vmatprep.mubr.f32.mxu0 0.0
    %306 = vmatmul.mubr.f32.gmra.mrb[0].mxu0 %v234
    %v307 = vpop.f32.mrb[0].mxu0
    %v308 = vadd.f32 0.0, %v307
    %v309 = vpop.f32.mrb[0].mxu0
    %310 = vdwg.mxu0
    %v311 = vlaneseq
    %v312 = vshrl.u32 %v311, 7
    %v313 = vsub.s32 0, %v312
    %v314 = vrot.slane %v46, %v313
    %315 = vmatprep.subr.mxu0 0.0
    %316 = vmatpush1.msra.mxu0 %v303
    %317 = vmatprep.subr.mxu0 0.0
    %318 = vmatpush1.msra.mxu0 %v308
    %319 = vmatprep.subr.mxu0 0.0
    %320 = vmatpush1.msra.mxu0 0.0
    %321 = vmatprep.subr.mxu0 0.0
    %322 = vmatpush1.msra.mxu0 0.0
    %323 = vmatprep.subr.mxu0 0.0
    %324 = vmatpush1.msra.mxu0 0.0
    %325 = vmatprep.subr.mxu0 0.0
    %326 = vmatpush1.msra.mxu0 0.0
    %327 = vmatprep.subr.mxu0 0.0
    %328 = vmatpush1.msra.mxu0 0.0
    %329 = vmatprep.subr.mxu0 0.0
    %330 = vmatpush1.msra.mxu0 0.0
    %331 = vmatprep.subr.mxu0 0.0
    %332 = vmatpush1.msra.mxu0 0.0
    %333 = vmatprep.subr.mxu0 0.0
    %334 = vmatpush1.msra.mxu0 0.0
    %335 = vmatprep.subr.mxu0 0.0
    %336 = vmatpush1.msra.mxu0 0.0
    %337 = vmatprep.subr.mxu0 0.0
    %338 = vmatpush1.msra.mxu0 0.0
    %339 = vmatprep.subr.mxu0 0.0
    %340 = vmatpush1.msra.mxu0 0.0
    %341 = vmatprep.subr.mxu0 0.0
    %342 = vmatpush1.msra.mxu0 0.0
    %343 = vmatprep.subr.mxu0 0.0
    %344 = vmatpush1.msra.mxu0 0.0
    %345 = vmatprep.subr.mxu0 0.0
    %346 = vmatpush1.msra.mxu0 0.0
    %347 = vmatprep.subr.mxu0 0.0
    %348 = vmatpush1.msra.mxu0 0.0
    %349 = vmatprep.subr.mxu0 0.0
    %350 = vmatpush1.msra.mxu0 0.0
    %351 = vmatprep.subr.mxu0 0.0
    %352 = vmatpush1.msra.mxu0 0.0
    %353 = vmatprep.subr.mxu0 0.0
    %354 = vmatpush1.msra.mxu0 0.0
    %355 = vmatprep.subr.mxu0 0.0
    %356 = vmatpush1.msra.mxu0 0.0
    %357 = vmatprep.subr.mxu0 0.0
    %358 = vmatpush1.msra.mxu0 0.0
    %359 = vmatprep.subr.mxu0 0.0
    %360 = vmatpush1.msra.mxu0 0.0
    %361 = vmatprep.subr.mxu0 0.0
    %362 = vmatpush1.msra.mxu0 0.0
    %363 = vmatprep.subr.mxu0 0.0
    %364 = vmatpush1.msra.mxu0 0.0
    %365 = vmatprep.subr.mxu0 0.0
    %366 = vmatpush1.msra.mxu0 0.0
    %367 = vmatprep.subr.mxu0 0.0
    %368 = vmatpush1.msra.mxu0 0.0
    %369 = vmatprep.subr.mxu0 0.0
    %370 = vmatpush1.msra.mxu0 0.0
    %371 = vmatprep.subr.mxu0 0.0
    %372 = vmatpush1.msra.mxu0 0.0
    %373 = vmatprep.subr.mxu0 0.0
    %374 = vmatpush1.msra.mxu0 0.0
    %375 = vmatprep.subr.mxu0 0.0
    %376 = vmatpush1.msra.mxu0 0.0
    %377 = vmatprep.subr.mxu0 0.0
    %378 = vmatpush1.msra.mxu0 0.0
    %379 = vmatprep.mubr.f32.mxu0 0.0
    %380 = vmatmul.mubr.f32.gmra.mrb[0].mxu0 %v147
    %v381 = vpop.f32.mrb[0].mxu0
    %v382 = vadd.f32 %v314, %v381
    %v383 = vpop.f32.mrb[0].mxu0
    %384 = vmatprep.mubr.f32.mxu0 0.0
    %385 = vmatmul.mubr.f32.gmra.mrb[0].mxu0 %v150
    %v386 = vpop.f32.mrb[0].mxu0
    %v387 = vadd.f32 %v314, %v386
    %v388 = vpop.f32.mrb[0].mxu0
    %389 = vdwg.mxu0
    %v390 = vmax.f32 %v382, 0.0
    %v391 = vmax.f32 %v387, 0.0
    %v393 = vsel %vm145, %v39, 0
    %395 = vmatprep.subr.mxu0 0.0
    %396 = vmatpush1.msra.mxu0 %v390
    %397 = vmatprep.subr.mxu0 0.0
    %398 = vmatpush1.msra.mxu0 %v391
    %399 = vmatprep.subr.mxu0 0.0
    %400 = vmatpush1.msra.mxu0 0.0
    %401 = vmatprep.subr.mxu0 0.0
    %402 = vmatpush1.msra.mxu0 0.0
    %403 = vmatprep.subr.mxu0 0.0
    %404 = vmatpush1.msra.mxu0 0.0
    %405 = vmatprep.subr.mxu0 0.0
    %406 = vmatpush1.msra.mxu0 0.0
    %407 = vmatprep.subr.mxu0 0.0
    %408 = vmatpush1.msra.mxu0 0.0
    %409 = vmatprep.subr.mxu0 0.0
    %410 = vmatpush1.msra.mxu0 0.0
    %411 = vmatprep.subr.mxu0 0.0
    %412 = vmatpush1.msra.mxu0 0.0
    %413 = vmatprep.subr.mxu0 0.0
    %414 = vmatpush1.msra.mxu0 0.0
    %415 = vmatprep.subr.mxu0 0.0
    %416 = vmatpush1.msra.mxu0 0.0
    %417 = vmatprep.subr.mxu0 0.0
    %418 = vmatpush1.msra.mxu0 0.0
    %419 = vmatprep.subr.mxu0 0.0
    %420 = vmatpush1.msra.mxu0 0.0
    %421 = vmatprep.subr.mxu0 0.0
    %422 = vmatpush1.msra.mxu0 0.0
    %423 = vmatprep.subr.mxu0 0.0
    %424 = vmatpush1.msra.mxu0 0.0
    %425 = vmatprep.subr.mxu0 0.0
    %426 = vmatpush1.msra.mxu0 0.0
    %427 = vmatprep.subr.mxu0 0.0
    %428 = vmatpush1.msra.mxu0 0.0
    %429 = vmatprep.subr.mxu0 0.0
    %430 = vmatpush1.msra.mxu0 0.0
    %431 = vmatprep.subr.mxu0 0.0
    %432 = vmatpush1.msra.mxu0 0.0
    %433 = vmatprep.subr.mxu0 0.0
    %434 = vmatpush1.msra.mxu0 0.0
    %435 = vmatprep.subr.mxu0 0.0
    %436 = vmatpush1.msra.mxu0 0.0
    %437 = vmatprep.subr.mxu0 0.0
    %438 = vmatpush1.msra.mxu0 0.0
    %439 = vmatprep.subr.mxu0 0.0
    %440 = vmatpush1.msra.mxu0 0.0
    %441 = vmatprep.subr.mxu0 0.0
    %442 = vmatpush1.msra.mxu0 0.0
    %443 = vmatprep.subr.mxu0 0.0
    %444 = vmatpush1.msra.mxu0 0.0
    %445 = vmatprep.subr.mxu0 0.0
    %446 = vmatpush1.msra.mxu0 0.0
    %447 = vmatprep.subr.mxu0 0.0
    %448 = vmatpush1.msra.mxu0 0.0
    %449 = vmatprep.subr.mxu0 0.0
    %450 = vmatpush1.msra.mxu0 0.0
    %451 = vmatprep.subr.mxu0 0.0
    %452 = vmatpush1.msra.mxu0 0.0
    %453 = vmatprep.subr.mxu0 0.0
    %454 = vmatpush1.msra.mxu0 0.0
    %455 = vmatprep.subr.mxu0 0.0
    %456 = vmatpush1.msra.mxu0 0.0
    %457 = vmatprep.subr.mxu0 0.0
    %458 = vmatpush1.msra.mxu0 0.0
    %459 = vmatprep.mubr.f32.mxu0 0.0
    %460 = vmatmul.mubr.f32.gmra.mrb[0].mxu0 %v393
    %v461 = vpop.f32.mrb[0].mxu0
    %v462 = vadd.f32 0.0, %v461
    %v463 = vpop.f32.mrb[0].mxu0
    %464 = vdwg.mxu0
    %v465 = vld [vmem:[%s5] sm:$0x7]
    %v466 = vld [vmem:[%s1] sm:$0xff]
    %v467 = vld [vmem:[%s1 + $0x8] sm:$0xff]
    %v468 = vld [vmem:[%s1 + $0x10] sm:$0xff]
    %v469 = vld [vmem:[%s1 + $0x18] sm:$0xff]
    %v470 = vld [vmem:[%s1 + $0x20] sm:$0xff]
    %v471 = vld [vmem:[%s1 + $0x28] sm:$0xff]
    %vm472 = vcmask 392192
    %v474 = vsel %vm472, %v465, 0
    %476 = vmatprep.subr.mxu0 0.0
    %477 = vmatpush1.msra.mxu0 %v466
    %478 = vmatprep.subr.mxu0 0.0
    %479 = vmatpush1.msra.mxu0 %v467
    %480 = vmatprep.subr.mxu0 0.0
    %481 = vmatpush1.msra.mxu0 %v468
    %482 = vmatprep.subr.mxu0 0.0
    %483 = vmatpush1.msra.mxu0 %v469
    %484 = vmatprep.subr.mxu0 0.0
    %485 = vmatpush1.msra.mxu0 %v470
    %486 = vmatprep.subr.mxu0 0.0
    %487 = vmatpush1.msra.mxu0 %v471
    %488 = vmatprep.subr.mxu0 0.0
    %489 = vmatpush1.msra.mxu0 0.0
    %490 = vmatprep.subr.mxu0 0.0
    %491 = vmatpush1.msra.mxu0 0.0
    %492 = vmatprep.subr.mxu0 0.0
    %493 = vmatpush1.msra.mxu0 0.0
    %494 = vmatprep.subr.mxu0 0.0
    %495 = vmatpush1.msra.mxu0 0.0
    %496 = vmatprep.subr.mxu0 0.0
    %497 = vmatpush1.msra.mxu0 0.0
    %498 = vmatprep.subr.mxu0 0.0
    %499 = vmatpush1.msra.mxu0 0.0
    %500 = vmatprep.subr.mxu0 0.0
    %501 = vmatpush1.msra.mxu0 0.0
    %502 = vmatprep.subr.mxu0 0.0
    %503 = vmatpush1.msra.mxu0 0.0
    %504 = vmatprep.subr.mxu0 0.0
    %505 = vmatpush1.msra.mxu0 0.0
    %506 = vmatprep.subr.mxu0 0.0
    %507 = vmatpush1.msra.mxu0 0.0
    %508 = vmatprep.subr.mxu0 0.0
    %509 = vmatpush1.msra.mxu0 0.0
    %510 = vmatprep.subr.mxu0 0.0
    %511 = vmatpush1.msra.mxu0 0.0
    %512 = vmatprep.subr.mxu0 0.0
    %513 = vmatpush1.msra.mxu0 0.0
    %514 = vmatprep.subr.mxu0 0.0
    %515 = vmatpush1.msra.mxu0 0.0
    %516 = vmatprep.subr.mxu0 0.0
    %517 = vmatpush1.msra.mxu0 0.0
    %518 = vmatprep.subr.mxu0 0.0
    %519 = vmatpush1.msra.mxu0 0.0
    %520 = vmatprep.subr.mxu0 0.0
    %521 = vmatpush1.msra.mxu0 0.0
    %522 = vmatprep.subr.mxu0 0.0
    %523 = vmatpush1.msra.mxu0 0.0
    %524 = vmatprep.subr.mxu0 0.0
    %525 = vmatpush1.msra.mxu0 0.0
    %526 = vmatprep.subr.mxu0 0.0
    %527 = vmatpush1.msra.mxu0 0.0
    %528 = vmatprep.subr.mxu0 0.0
    %529 = vmatpush1.msra.mxu0 0.0
    %530 = vmatprep.subr.mxu0 0.0
    %531 = vmatpush1.msra.mxu0 0.0
    %532 = vmatprep.subr.mxu0 0.0
    %533 = vmatpush1.msra.mxu0 0.0
    %534 = vmatprep.subr.mxu0 0.0
    %535 = vmatpush1.msra.mxu0 0.0
    %536 = vmatprep.subr.mxu0 0.0
    %537 = vmatpush1.msra.mxu0 0.0
    %538 = vmatprep.subr.mxu0 0.0
    %539 = vmatpush1.msra.mxu0 0.0
    %540 = vmatprep.mubr.f32.mxu0 0.0
    %541 = vmatmul.mubr.f32.gmra.mrb[0].mxu0 %v474
    %v542 = vpop.f32.mrb[0].mxu0
    %v543 = vadd.f32 0.0, %v542
    %v544 = vpop.f32.mrb[0].mxu0
    %545 = vdwg.mxu0
    %vm546 = vcmask 15360
    %v548 = vsel %vm546, %v543, 0
    %vm550 = vcmask 1041408
    %v552 = vsel %vm550, %v51, 0
    %554 = vmatprep.subr.mxu0 0.0
    %555 = vmatpush1.msra.mxu0 %v552
    %556 = vmatprep.subr.mxu0 0.0
    %557 = vmatpush1.msra.mxu0 0.0
    %558 = vmatprep.subr.mxu0 0.0
    %559 = vmatpush1.msra.mxu0 0.0
    %560 = vmatprep.subr.mxu0 0.0
    %561 = vmatpush1.msra.mxu0 0.0
    %562 = vmatprep.subr.mxu0 0.0
    %563 = vmatpush1.msra.mxu0 0.0
    %564 = vmatprep.subr.mxu0 0.0
    %565 = vmatpush1.msra.mxu0 0.0
    %566 = vmatprep.subr.mxu0 0.0
    %567 = vmatpush1.msra.mxu0 0.0
    %568 = vmatprep.subr.mxu0 0.0
    %569 = vmatpush1.msra.mxu0 0.0
    %570 = vmatprep.subr.mxu0 0.0
    %571 = vmatpush1.msra.mxu0 0.0
    %572 = vmatprep.subr.mxu0 0.0
    %573 = vmatpush1.msra.mxu0 0.0
    %574 = vmatprep.subr.mxu0 0.0
    %575 = vmatpush1.msra.mxu0 0.0
    %576 = vmatprep.subr.mxu0 0.0
    %577 = vmatpush1.msra.mxu0 0.0
    %578 = vmatprep.subr.mxu0 0.0
    %579 = vmatpush1.msra.mxu0 0.0
    %580 = vmatprep.subr.mxu0 0.0
    %581 = vmatpush1.msra.mxu0 0.0
    %582 = vmatprep.subr.mxu0 0.0
    %583 = vmatpush1.msra.mxu0 0.0
    %584 = vmatprep.subr.mxu0 0.0
    %585 = vmatpush1.msra.mxu0 0.0
    %586 = vmatprep.subr.mxu0 0.0
    %587 = vmatpush1.msra.mxu0 0.0
    %588 = vmatprep.subr.mxu0 0.0
    %589 = vmatpush1.msra.mxu0 0.0
    %590 = vmatprep.subr.mxu0 0.0
    %591 = vmatpush1.msra.mxu0 0.0
    %592 = vmatprep.subr.mxu0 0.0
    %593 = vmatpush1.msra.mxu0 0.0
    %594 = vmatprep.subr.mxu0 0.0
    %595 = vmatpush1.msra.mxu0 0.0
    %596 = vmatprep.subr.mxu0 0.0
    %597 = vmatpush1.msra.mxu0 0.0
    %598 = vmatprep.subr.mxu0 0.0
    %599 = vmatpush1.msra.mxu0 0.0
    %600 = vmatprep.subr.mxu0 0.0
    %601 = vmatpush1.msra.mxu0 0.0
    %602 = vmatprep.subr.mxu0 0.0
    %603 = vmatpush1.msra.mxu0 0.0
    %604 = vmatprep.subr.mxu0 0.0
    %605 = vmatpush1.msra.mxu0 0.0
    %606 = vmatprep.subr.mxu0 0.0
    %607 = vmatpush1.msra.mxu0 0.0
    %608 = vmatprep.subr.mxu0 0.0
    %609 = vmatpush1.msra.mxu0 0.0
    %610 = vmatprep.subr.mxu0 0.0
    %611 = vmatpush1.msra.mxu0 0.0
    %612 = vmatprep.subr.mxu0 0.0
    %613 = vmatpush1.msra.mxu0 0.0
    %614 = vmatprep.subr.mxu0 0.0
    %615 = vmatpush1.msra.mxu0 0.0
    %616 = vmatprep.subr.mxu0 0.0
    %617 = vmatpush1.msra.mxu0 0.0
    %618 = vmatprep.mubr.f32.mxu0 0.0
    %619 = vmatmul.mubr.f32.gmra.mrb[0].mxu0 %v548
    %v620 = vpop.f32.mrb[0].mxu0
    %v621 = vadd.f32 0.0, %v620
    %v622 = vpop.f32.mrb[0].mxu0
    %623 = vdwg.mxu0
    %v625 = vsel %vm229, %v462, 0
    %627 = vmatprep.subr.mxu0 0.0
    %628 = vmatpush1.msra.mxu0 %v47
    %629 = vmatprep.subr.mxu0 0.0
    %630 = vmatpush1.msra.mxu0 %v48
    %631 = vmatprep.subr.mxu0 0.0
    %632 = vmatpush1.msra.mxu0 %v49
    %633 = vmatprep.subr.mxu0 0.0
    %634 = vmatpush1.msra.mxu0 %v50
    %635 = vmatprep.subr.mxu0 0.0
    %636 = vmatpush1.msra.mxu0 0.0
    %637 = vmatprep.subr.mxu0 0.0
    %638 = vmatpush1.msra.mxu0 0.0
    %639 = vmatprep.subr.mxu0 0.0
    %640 = vmatpush1.msra.mxu0 0.0
    %641 = vmatprep.subr.mxu0 0.0
    %642 = vmatpush1.msra.mxu0 0.0
    %643 = vmatprep.subr.mxu0 0.0
    %644 = vmatpush1.msra.mxu0 0.0
    %645 = vmatprep.subr.mxu0 0.0
    %646 = vmatpush1.msra.mxu0 0.0
    %647 = vmatprep.subr.mxu0 0.0
    %648 = vmatpush1.msra.mxu0 0.0
    %649 = vmatprep.subr.mxu0 0.0
    %650 = vmatpush1.msra.mxu0 0.0
    %651 = vmatprep.subr.mxu0 0.0
    %652 = vmatpush1.msra.mxu0 0.0
    %653 = vmatprep.subr.mxu0 0.0
    %654 = vmatpush1.msra.mxu0 0.0
    %655 = vmatprep.subr.mxu0 0.0
    %656 = vmatpush1.msra.mxu0 0.0
    %657 = vmatprep.subr.mxu0 0.0
    %658 = vmatpush1.msra.mxu0 0.0
    %659 = vmatprep.subr.mxu0 0.0
    %660 = vmatpush1.msra.mxu0 0.0
    %661 = vmatprep.subr.mxu0 0.0
    %662 = vmatpush1.msra.mxu0 0.0
    %663 = vmatprep.subr.mxu0 0.0
    %664 = vmatpush1.msra.mxu0 0.0
    %665 = vmatprep.subr.mxu0 0.0
    %666 = vmatpush1.msra.mxu0 0.0
    %667 = vmatprep.subr.mxu0 0.0
    %668 = vmatpush1.msra.mxu0 0.0
    %669 = vmatprep.subr.mxu0 0.0
    %670 = vmatpush1.msra.mxu0 0.0
    %671 = vmatprep.subr.mxu0 0.0
    %672 = vmatpush1.msra.mxu0 0.0
    %673 = vmatprep.subr.mxu0 0.0
    %674 = vmatpush1.msra.mxu0 0.0
    %675 = vmatprep.subr.mxu0 0.0
    %676 = vmatpush1.msra.mxu0 0.0
    %677 = vmatprep.subr.mxu0 0.0
    %678 = vmatpush1.msra.mxu0 0.0
    %679 = vmatprep.subr.mxu0 0.0
    %680 = vmatpush1.msra.mxu0 0.0
    %681 = vmatprep.subr.mxu0 0.0
    %682 = vmatpush1.msra.mxu0 0.0
    %683 = vmatprep.subr.mxu0 0.0
    %684 = vmatpush1.msra.mxu0 0.0
    %685 = vmatprep.subr.mxu0 0.0
    %686 = vmatpush1.msra.mxu0 0.0
    %687 = vmatprep.subr.mxu0 0.0
    %688 = vmatpush1.msra.mxu0 0.0
    %689 = vmatprep.subr.mxu0 0.0
    %690 = vmatpush1.msra.mxu0 0.0
    %691 = vmatprep.mubr.f32.mxu0 0.0
    %692 = vmatmul.mubr.f32.gmra.mrb[0].mxu0 %v625
    %v693 = vpop.f32.mrb[0].mxu0
    %v694 = vadd.f32 %v621, %v693
    %v695 = vpop.f32.mrb[0].mxu0
    %696 = vdwg.mxu0
    %v697 = vadd.f32 %v694, %v52
    %vm698 = vcmask 2048
    %699 = vst.msk [vmem:[%s6] sm:$0x7] %vm698, %v697
    // Predicated region
    $region30: #{forward.1} parent=1 // pred_check
      _
    $region31: #{forward.1} parent=1 // pred_check_branch
      %701 = sbr.rel (0) target = $region33
    $region32: #{forward.1} parent=1 // pred_region
      _
    $region33: #{forward.1} parent=1 // pred_fallthru
      _
    // Predicated region
    $region34: #{forward.1} parent=1 // pred_check
      _
    $region35: #{forward.1} parent=1 // pred_check_branch
      %703 = sbr.rel (0) target = $region37
    $region36: #{forward.1} parent=1 // pred_region
      _
    $region37: #{forward.1} parent=1 // pred_fallthru
      _
    %704 = vsyncpa [#allocation3], 1

</llo_original>
